<compile_context>
chip_gen: v5e
topology: v5e:2x2
jax: 0.10.0
libtpu: 0.0.40
codegen_flags: <defaults>
</compile_context>

<pallas_src>
import jax
import jax.numpy as jnp
from jax.experimental import pallas as pl
from jax.experimental.pallas import tpu as pltpu

HIDDEN = 32
CHUNK = 1024          # in-kernel lane sub-chunk (multiple of 128)


def _make_kernel(n_chunks, chunk, tanh_dtype):
    def kernel(xt_ref, w1_ref, b1_ref, w2t_ref, b2_ref, w3_ref, b3_ref, o_ref):
        # Tiny constants: load once per grid step, reuse across all chunks.
        w1 = w1_ref[...]            # (32, 1)  f32
        b1 = b1_ref[...]            # (32, 1)  f32
        w2t = w2t_ref[...]          # (32, 32) f32 or bf16 (pre-cast in wrapper)
        b2 = b2_ref[...]            # (32, 1)  f32
        w3 = w3_ref[...]            # (32, 1)  f32
        b3 = b3_ref[...]            # (1, 1)   f32

        @pl.loop(0, n_chunks)
        def _(c):
            start = pl.multiple_of(c * chunk, chunk)
            x = xt_ref[:, pl.ds(start, chunk)]                     # (1, chunk)

            # Layer 1: Linear(1, 32). K=1 contraction == rank-1 outer product,
            # done on the VPU via broadcasting (no MXU push).
            z1 = w1 * x + b1                                       # (32, chunk) f32
            h1 = jnp.tanh(z1.astype(tanh_dtype))                   # EUP

            # Layer 2: Linear(32, 32). The only real matmul -> MXU.
            # h2^T = W2^T @ h1^T; operands stay in tanh_dtype (bf16 on
            # v6e/v7x -> no cast pass between tanh and the MXU), f32 accumulate.
            z2 = jnp.dot(w2t, h1,
                         preferred_element_type=jnp.float32) + b2  # (32, chunk) f32
            h2 = jnp.tanh(z2.astype(tanh_dtype)).astype(jnp.float32)

            # Layer 3: Linear(32, 1). Output width 1 -> elementwise multiply
            # + 32-wide sublane reduction (XLU); stays lane-dense (1, chunk).
            y = jnp.sum(h2 * w3, axis=0, keepdims=True) + b3        # (1, chunk)
            o_ref[:, pl.ds(start, chunk)] = y.astype(o_ref.dtype)

    return kernel


def _chip_defaults():
    kind = jax.devices()[0].device_kind.lower()
    # bf16 EUP tanh only pays off on v6e / v7x; v5e (and older) stay in f32.
    use_bf16 = ("v6" in kind) or ("v7" in kind)
    tanh_dtype = jnp.bfloat16 if use_bf16 else jnp.float32
    # v7x has 64 MiB VMEM/TC (32 MiB scoped default); v5e/v6e have 128 MiB.
    bt_max = 32768 if "v7" in kind else 65536
    return tanh_dtype, bt_max


def _pick_bt(n, bt_max):
    # Aim for >= 2 roughly-equal tiles (both v7x TCs get work) while keeping
    # bt a multiple of CHUNK and <= bt_max; padding waste is <= one chunk.
    half = -(-n // 2)
    bt = -(-half // CHUNK) * CHUNK
    return max(CHUNK, min(bt, bt_max))


def simple_nn_forward(t, params, *, bt=None, tanh_dtype=None):
    """t: (N, 1) float32.  params: w1,b1,w2,b2,w3,b3 in (in, out) layout.
    tanh_dtype=None -> per-chip default (bf16 on v6e/v7x, f32 elsewhere)."""
    auto_tanh, bt_max = _chip_defaults()
    if tanh_dtype is None:
        tanh_dtype = auto_tanh

    N = t.shape[0]
    if bt is None:
        bt = _pick_bt(N, bt_max)
    assert bt % CHUNK == 0 and bt > 0
    n_tiles = pl.cdiv(N, bt)
    n_pad = n_tiles * bt
    n_chunks = bt // CHUNK

    # Batch on the lane axis (lane-dense, unmasked vld/vst).
    xt = t.astype(jnp.float32).reshape(1, N)
    if n_pad != N:                      # ragged tail: padded lanes are computed & dropped
        xt = jnp.pad(xt, ((0, 0), (0, n_pad - N)))

    mxu_dtype = (jnp.bfloat16 if jnp.dtype(tanh_dtype) == jnp.dtype(jnp.bfloat16)
                 else jnp.float32)
    w1c = params["w1"].astype(jnp.float32).reshape(HIDDEN, 1)
    b1c = params["b1"].astype(jnp.float32).reshape(HIDDEN, 1)
    w2t = params["w2"].astype(jnp.float32).T.astype(mxu_dtype)    # (out, in)
    b2c = params["b2"].astype(jnp.float32).reshape(HIDDEN, 1)
    w3c = params["w3"].astype(jnp.float32).reshape(HIDDEN, 1)
    b3c = params["b3"].astype(jnp.float32).reshape(1, 1)

    const = lambda shape: pl.BlockSpec(shape, lambda i: (0, 0))

    # Per element: L1 ~64 flops, L2 2*32*32+32, L3 ~96, and 64 tanh; 8 B HBM.
    cost = pl.CostEstimate(flops=2240 * n_pad, transcendentals=64 * n_pad,
                           bytes_accessed=8 * n_pad)

    out = pl.pallas_call(
        _make_kernel(n_chunks, CHUNK, tanh_dtype),
        out_shape=jax.ShapeDtypeStruct((1, n_pad), jnp.float32),
        grid_spec=pl.GridSpec(
            grid=(n_tiles,),
            in_specs=[
                pl.BlockSpec((1, bt), lambda i: (0, i)),   # x^T tile (lane-dense)
                const((HIDDEN, 1)),                        # w1 column
                const((HIDDEN, 1)),                        # b1
                const((HIDDEN, HIDDEN)),                   # W2^T
                const((HIDDEN, 1)),                        # b2
                const((HIDDEN, 1)),                        # w3
                const((1, 1)),                             # b3
            ],
            out_specs=pl.BlockSpec((1, bt), lambda i: (0, i)),
        ),
        compiler_params=pltpu.CompilerParams(
            dimension_semantics=("parallel",),   # batch tiles shard across v7x TCs
        ),
        cost_estimate=cost,
    )(xt, w1c, b1c, w2t, b2c, w3c, b3c)

    y = out.reshape(n_pad, 1)
    return y if n_pad == N else y[:N]


def init_params(key):
    """Deterministic init mimicking nn.Linear's U(-1/sqrt(fan_in), 1/sqrt(fan_in))."""
    k1, k2, k3, k4, k5, k6 = jax.random.split(key, 6)

    def uni(k, shape, fan_in):
        bound = 1.0 / jnp.sqrt(jnp.float32(fan_in))
        return jax.random.uniform(k, shape, jnp.float32, -bound, bound)

    return {
        "w1": uni(k1, (1, HIDDEN), 1),
        "b1": uni(k2, (1, HIDDEN), 1),
        "w2": uni(k3, (HIDDEN, HIDDEN), HIDDEN),
        "b2": uni(k4, (1, HIDDEN), HIDDEN),
        "w3": uni(k5, (HIDDEN, 1), HIDDEN),
        "b3": uni(k6, (1, 1), HIDDEN),
    }


def _reference(t, p):
    h1 = jnp.tanh(t @ p["w1"] + p["b1"])
    h2 = jnp.tanh(h1 @ p["w2"] + p["b2"])
    return h2 @ p["w3"] + p["b3"]


if __name__ == "__main__":
    key = jax.random.PRNGKey(0)
    kp, kt = jax.random.split(key)
    params = init_params(kp)

    # Small, NOT a multiple of the chunk size -> exercises the pad-and-slice
    # ragged-tail path (single tile).
    N = 1000
    t = jax.random.normal(kt, (N, 1), jnp.float32)
    ref = _reference(t, params)

    # f32-tanh path: strict 1e-5 contract.
    out = jax.block_until_ready(
        simple_nn_forward(t, params, tanh_dtype=jnp.float32))
    assert out.shape == (N, 1)
    assert jnp.allclose(out, ref, atol=1e-5, rtol=1e-5), float(
        jnp.max(jnp.abs(out - ref)))

    # Per-chip default path (bf16 tanh + bf16 MXU operands on v6e/v7x, f32 on
    # v5e and older); looser tolerance for the bf16 case.
    out_auto = jax.block_until_ready(simple_nn_forward(t, params))
    assert out_auto.shape == (N, 1)
    assert jnp.allclose(out_auto, ref, atol=3e-2, rtol=3e-2)

    # Larger batch: exact multiple of the tile -> multi-tile, no pad / no
    # slice fast path (2 tiles on v5e/v6e, 4 on v7x), f32 accuracy contract.
    N2 = 131072
    t2 = jax.random.normal(kt, (N2, 1), jnp.float32)
    out2 = jax.block_until_ready(
        simple_nn_forward(t2, params, tanh_dtype=jnp.float32))
    assert out2.shape == (N2, 1)
    assert jnp.allclose(out2, _reference(t2, params), atol=1e-5, rtol=1e-5)

    print("KERNEL_OK")
</pallas_src>

<mosaic_0001>
module attributes {stable_mosaic.version = 11 : i64} {
  func.func @kernel(%arg0: i32, %arg1: memref<1x1024xf32, #tpu.memory_space<vmem>>, %arg2: memref<32x1xf32, #tpu.memory_space<vmem>>, %arg3: memref<32x1xf32, #tpu.memory_space<vmem>>, %arg4: memref<32x32xf32, #tpu.memory_space<vmem>>, %arg5: memref<32x1xf32, #tpu.memory_space<vmem>>, %arg6: memref<32x1xf32, #tpu.memory_space<vmem>>, %arg7: memref<1x1xf32, #tpu.memory_space<vmem>>, %arg8: memref<1x1024xf32, #tpu.memory_space<vmem>>) attributes {dimension_semantics = [#tpu.dimension_semantics<parallel>], iteration_bounds = array<i64: 1>, scalar_prefetch = 0 : i64, scratch_operands = 0 : i64, tpu.core_type = #tpu.core_type<tc>, window_params = [{transform_indices = @transform_0, window_bounds = array<i64: 1, 1024>}, {pipeline_mode = #tpu.pipeline_mode<synchronous>, transform_indices = @transform_1, window_bounds = array<i64: 32, 1>}, {pipeline_mode = #tpu.pipeline_mode<synchronous>, transform_indices = @transform_2, window_bounds = array<i64: 32, 1>}, {pipeline_mode = #tpu.pipeline_mode<synchronous>, transform_indices = @transform_3, window_bounds = array<i64: 32, 32>}, {pipeline_mode = #tpu.pipeline_mode<synchronous>, transform_indices = @transform_4, window_bounds = array<i64: 32, 1>}, {pipeline_mode = #tpu.pipeline_mode<synchronous>, transform_indices = @transform_5, window_bounds = array<i64: 32, 1>}, {pipeline_mode = #tpu.pipeline_mode<synchronous>, transform_indices = @transform_6, window_bounds = array<i64: 1, 1>}, {transform_indices = @transform_7, window_bounds = array<i64: 1, 1024>}]} {
    %c0 = arith.constant 0 : index
    %c0_0 = arith.constant 0 : index
    %0 = vector.load %arg2[%c0, %c0_0] : memref<32x1xf32, #tpu.memory_space<vmem>>, vector<32x1xf32>
    %c0_1 = arith.constant 0 : index
    %c0_2 = arith.constant 0 : index
    %1 = vector.load %arg3[%c0_1, %c0_2] : memref<32x1xf32, #tpu.memory_space<vmem>>, vector<32x1xf32>
    %c0_3 = arith.constant 0 : index
    %c0_4 = arith.constant 0 : index
    %2 = vector.load %arg4[%c0_3, %c0_4] : memref<32x32xf32, #tpu.memory_space<vmem>>, vector<32x32xf32>
    %c0_5 = arith.constant 0 : index
    %c0_6 = arith.constant 0 : index
    %3 = vector.load %arg5[%c0_5, %c0_6] : memref<32x1xf32, #tpu.memory_space<vmem>>, vector<32x1xf32>
    %c0_7 = arith.constant 0 : index
    %c0_8 = arith.constant 0 : index
    %4 = vector.load %arg6[%c0_7, %c0_8] : memref<32x1xf32, #tpu.memory_space<vmem>>, vector<32x1xf32>
    %c0_9 = arith.constant 0 : index
    %c0_10 = arith.constant 0 : index
    %5 = vector.load %arg7[%c0_9, %c0_10] : memref<1x1xf32, #tpu.memory_space<vmem>>, vector<1x1xf32>
    %c0_i32 = arith.constant 0 : i32
    %c1_i32 = arith.constant 1 : i32
    %6 = arith.muli %c0_i32, %c1_i32 : i32
    %c0_i32_11 = arith.constant 0 : i32
    %7 = arith.addi %c0_i32_11, %6 : i32
    %c1024_i32 = arith.constant 1024 : i32
    %8 = arith.muli %7, %c1024_i32 : i32
    %9 = tpu.assume_multiple %8, 1024 : i32
    %c0_12 = arith.constant 0 : index
    %10 = arith.index_cast %9 : i32 to index
    %11 = vector.load %arg1[%c0_12, %10] : memref<1x1024xf32, #tpu.memory_space<vmem>>, vector<1x1024xf32>
    %12 = vector.broadcast %0 : vector<32x1xf32> to vector<32x1024xf32>
    %13 = vector.broadcast %11 : vector<1x1024xf32> to vector<32x1024xf32>
    %14 = arith.mulf %12, %13 : vector<32x1024xf32>
    %15 = vector.broadcast %1 : vector<32x1xf32> to vector<32x1024xf32>
    %16 = arith.addf %14, %15 : vector<32x1024xf32>
    %17 = math.tanh %16 : vector<32x1024xf32>
    %cst = arith.constant dense<0.000000e+00> : vector<32x1024xf32>
    %18 = tpu.matmul %2, %17, %cst {dimension_numbers = #tpu.dot_dimension_numbers<[1], [0], [0], [1], [0, 0, 1, 1], [], []>} : vector<32x32xf32>, vector<32x1024xf32>, vector<32x1024xf32> -> vector<32x1024xf32>
    %19 = vector.broadcast %3 : vector<32x1xf32> to vector<32x1024xf32>
    %20 = arith.addf %18, %19 : vector<32x1024xf32>
    %21 = math.tanh %20 : vector<32x1024xf32>
    %22 = vector.broadcast %4 : vector<32x1xf32> to vector<32x1024xf32>
    %23 = arith.mulf %21, %22 : vector<32x1024xf32>
    %cst_13 = arith.constant dense<0.000000e+00> : vector<1024xf32>
    %24 = vector.multi_reduction <add>, %23, %cst_13 [0] : vector<32x1024xf32> to vector<1024xf32>
    %25 = vector.shape_cast %24 : vector<1024xf32> to vector<1x1024xf32>
    %26 = vector.broadcast %5 : vector<1x1xf32> to vector<1x1024xf32>
    %27 = arith.addf %25, %26 : vector<1x1024xf32>
    %c0_14 = arith.constant 0 : index
    %28 = arith.index_cast %9 : i32 to index
    %29 = vector.load %arg8[%c0_14, %28] : memref<1x1024xf32, #tpu.memory_space<vmem>>, vector<1x1024xf32>
    tpu.vector_store %arg8[%c0_14, %28], %27 {strides = array<i32>} : memref<1x1024xf32, #tpu.memory_space<vmem>>, vector<1x1024xf32>,
    %c1_i32_15 = arith.constant 1 : i32
    return
  }
  func.func @transform_0(%arg0: i32) -> (i32, i32) {
    %c0_i32 = arith.constant 0 : i32
    %c0_i32_0 = arith.constant 0 : i32
    return %c0_i32, %arg0 : i32, i32
  }
  func.func @transform_1(%arg0: i32) -> (i32, i32) {
    %c0_i32 = arith.constant 0 : i32
    %c0_i32_0 = arith.constant 0 : i32
    %c0_i32_1 = arith.constant 0 : i32
    return %c0_i32, %c0_i32_0 : i32, i32
  }
  func.func @transform_2(%arg0: i32) -> (i32, i32) {
    %c0_i32 = arith.constant 0 : i32
    %c0_i32_0 = arith.constant 0 : i32
    %c0_i32_1 = arith.constant 0 : i32
    return %c0_i32, %c0_i32_0 : i32, i32
  }
  func.func @transform_3(%arg0: i32) -> (i32, i32) {
    %c0_i32 = arith.constant 0 : i32
    %c0_i32_0 = arith.constant 0 : i32
    %c0_i32_1 = arith.constant 0 : i32
    return %c0_i32, %c0_i32_0 : i32, i32
  }
  func.func @transform_4(%arg0: i32) -> (i32, i32) {
    %c0_i32 = arith.constant 0 : i32
    %c0_i32_0 = arith.constant 0 : i32
    %c0_i32_1 = arith.constant 0 : i32
    return %c0_i32, %c0_i32_0 : i32, i32
  }
  func.func @transform_5(%arg0: i32) -> (i32, i32) {
    %c0_i32 = arith.constant 0 : i32
    %c0_i32_0 = arith.constant 0 : i32
    %c0_i32_1 = arith.constant 0 : i32
    return %c0_i32, %c0_i32_0 : i32, i32
  }
  func.func @transform_6(%arg0: i32) -> (i32, i32) {
    %c0_i32 = arith.constant 0 : i32
    %c0_i32_0 = arith.constant 0 : i32
    %c0_i32_1 = arith.constant 0 : i32
    return %c0_i32, %c0_i32_0 : i32, i32
  }
  func.func @transform_7(%arg0: i32) -> (i32, i32) {
    %c0_i32 = arith.constant 0 : i32
    %c0_i32_0 = arith.constant 0 : i32
    return %c0_i32, %arg0 : i32, i32
  }
}

</mosaic_0001>

<llo_original>
// kernel: tpu_custom_call.1
$region0: #{tpu_custom_call.1}
  #allocation0 [shape = 'u32[]', space=smem, size = 0x4, offset = 0x4, fixed_abs, tag = 'smem constant byte address 0x4 - core index']
  #allocation1 [shape = 'u32[72,128]{1,0:T(1,128)}', space=vmem, size = 0x9000, scoped, tag = 'internal scratch']
  #allocation2 [shape = 'f32[1,1]{1,0:T(1,128)S(1)}', space=vmem, size = 0x200, scoped, tag = 'scoped memory for tpu_custom_call.1']
  %s0 = inlined_call_operand.vmem [shape: f32[1,1024], index: 0, kind: input, shape index: {}]
  %s1 = inlined_call_operand.vmem [shape: f32[32,1], index: 1, kind: input, shape index: {}]
  %s2 = inlined_call_operand.vmem [shape: f32[32,1], index: 2, kind: input, shape index: {}]
  %s3 = inlined_call_operand.vmem [shape: f32[32,32], index: 3, kind: input, shape index: {}]
  %s4 = inlined_call_operand.vmem [shape: f32[32,1], index: 4, kind: input, shape index: {}]
  %s5 = inlined_call_operand.vmem [shape: f32[32,1], index: 5, kind: input, shape index: {}]
  %s6 = inlined_call_operand.<no memory space> [shape: f32[1,1], index: 6, kind: input, shape index: {}]
  %s7 = inlined_call_operand.hbm [shape: f32[1,1024], index: 7, kind: output, shape index: {}]
  %s8 = sld [smem:[#allocation0]]
  $region38: #{tpu_custom_call.1} parent=0
    _
  %s10 = ssub.s32 1, %s8
  %s11 = scalar_select 0, %s10, %s8
  %v12 = vstv %s6
  %13 = vst [vmem:[#allocation2] sm:$0x1] %v12
  $region1: #{tpu_custom_call.1} parent=0
    #allocation3 [shape = 'u8[4096]{0}', space=vmem, size = 0x1000, scoped, tag = 'output window, operand 0, single buffered']
    #allocation4 [shape = 's32[1]{0}', space=sflag, size = 0x4, scoped, tag = 'scoped memory for tpu_custom_call.1']
    %14 = vsyncpa [#allocation4], 0
    // Predicated region
    $region2: #{tpu_custom_call.1} parent=1 // pred_check
      _
    $region3: #{tpu_custom_call.1} parent=1 // pred_check_branch
      %16 = sbr.rel (0) target = $region5
    $region4: #{tpu_custom_call.1} parent=1 // pred_region
      _
    $region5: #{tpu_custom_call.1} parent=1 // pred_fallthru
      _
    // Predicated region
    $region6: #{tpu_custom_call.1} parent=1 // pred_check
      _
    $region7: #{tpu_custom_call.1} parent=1 // pred_check_branch
      %18 = sbr.rel (0) target = $region9
    $region8: #{tpu_custom_call.1} parent=1 // pred_region
      _
    $region9: #{tpu_custom_call.1} parent=1 // pred_fallthru
      _
    // Predicated region
    $region10: #{tpu_custom_call.1} parent=1 // pred_check
      _
    $region11: #{tpu_custom_call.1} parent=1 // pred_check_branch
      %20 = sbr.rel (0) target = $region13
    $region12: #{tpu_custom_call.1} parent=1 // pred_region
      _
    $region13: #{tpu_custom_call.1} parent=1 // pred_fallthru
      _
    // Predicated region
    $region14: #{tpu_custom_call.1} parent=1 // pred_check
      _
    $region15: #{tpu_custom_call.1} parent=1 // pred_check_branch
      %22 = sbr.rel (0) target = $region17
    $region16: #{tpu_custom_call.1} parent=1 // pred_region
      _
    $region17: #{tpu_custom_call.1} parent=1 // pred_fallthru
      _
    // Predicated region
    $region18: #{tpu_custom_call.1} parent=1 // pred_check
      _
    $region19: #{tpu_custom_call.1} parent=1 // pred_check_branch
      %24 = sbr.rel (0) target = $region21
    $region20: #{tpu_custom_call.1} parent=1 // pred_region
      _
    $region21: #{tpu_custom_call.1} parent=1 // pred_fallthru
      _
    // Predicated region
    $region22: #{tpu_custom_call.1} parent=1 // pred_check
      _
    $region23: #{tpu_custom_call.1} parent=1 // pred_check_branch
      %26 = sbr.rel (0) target = $region25
    $region24: #{tpu_custom_call.1} parent=1 // pred_region
      _
    $region25: #{tpu_custom_call.1} parent=1 // pred_fallthru
      _
    // Predicated region
    $region26: #{tpu_custom_call.1} parent=1 // pred_check
      _
    $region27: #{tpu_custom_call.1} parent=1 // pred_check_branch
      %28 = sbr.rel (0) target = $region29
    $region28: #{tpu_custom_call.1} parent=1 // pred_region
      _
    $region29: #{tpu_custom_call.1} parent=1 // pred_fallthru
      _
    %v29 = vld [vmem:[%s1] sm:$0xff]
    %v30 = vld [vmem:[%s1 + $0x8] sm:$0xff]
    %v31 = vld [vmem:[%s1 + $0x10] sm:$0xff]
    %v32 = vld [vmem:[%s1 + $0x18] sm:$0xff]
    %v33 = vld [vmem:[%s2] sm:$0xff]
    %v34 = vld [vmem:[%s2 + $0x8] sm:$0xff]
    %v35 = vld [vmem:[%s2 + $0x10] sm:$0xff]
    %v36 = vld [vmem:[%s2 + $0x18] sm:$0xff]
    %v37 = vld [vmem:[%s3] sm:$0xff]
    %v38 = vld [vmem:[%s3 + $0x8] sm:$0xff]
    %v39 = vld [vmem:[%s3 + $0x10] sm:$0xff]
    %v40 = vld [vmem:[%s3 + $0x18] sm:$0xff]
    %v41 = vld [vmem:[%s4] sm:$0xff]
    %v42 = vld [vmem:[%s4 + $0x8] sm:$0xff]
    %v43 = vld [vmem:[%s4 + $0x10] sm:$0xff]
    %v44 = vld [vmem:[%s4 + $0x18] sm:$0xff]
    %v45 = vld [vmem:[%s5] sm:$0xff]
    %v46 = vld [vmem:[%s5 + $0x8] sm:$0xff]
    %v47 = vld [vmem:[%s5 + $0x10] sm:$0xff]
    %v48 = vld [vmem:[%s5 + $0x18] sm:$0xff]
    %v49 = vld [vmem:[#allocation2] sm:$0x1]
    %v50 = vld [vmem:[%s0] sm:$0xff]
    %52 = vset.pattern.permute.xlu0 0
    %53 = vperm.xlu0 %52, %v29
    %v54 = vpop.permute.xlu0 %53
    %57 = vset.pattern.permute.xlu0 0
    %58 = vperm.xlu0 %57, %v30
    %v59 = vpop.permute.xlu0 %58
    %62 = vset.pattern.permute.xlu0 0
    %63 = vperm.xlu0 %62, %v31
    %v64 = vpop.permute.xlu0 %63
    %67 = vset.pattern.permute.xlu0 0
    %68 = vperm.xlu0 %67, %v32
    %v69 = vpop.permute.xlu0 %68
    %v72 = vperm.slane %v50, 0
    %v73 = vperm.slane %v50, 1
    %v74 = vperm.slane %v50, 2
    %v75 = vperm.slane %v50, 3
    %v76 = vperm.slane %v50, 4
    %v77 = vperm.slane %v50, 5
    %v78 = vperm.slane %v50, 6
    %v79 = vperm.slane %v50, 7
    %v88 = vmul.f32 %v54, %v72
    %v89 = vmul.f32 %v54, %v73
    %v90 = vmul.f32 %v54, %v74
    %v91 = vmul.f32 %v54, %v75
    %v92 = vmul.f32 %v54, %v76
    %v93 = vmul.f32 %v54, %v77
    %v94 = vmul.f32 %v54, %v78
    %v95 = vmul.f32 %v54, %v79
    %v96 = vmul.f32 %v59, %v72
    %v97 = vmul.f32 %v59, %v73
    %v98 = vmul.f32 %v59, %v74
    %v99 = vmul.f32 %v59, %v75
    %v100 = vmul.f32 %v59, %v76
    %v101 = vmul.f32 %v59, %v77
    %v102 = vmul.f32 %v59, %v78
    %v103 = vmul.f32 %v59, %v79
    %v104 = vmul.f32 %v64, %v72
    %v105 = vmul.f32 %v64, %v73
    %v106 = vmul.f32 %v64, %v74
    %v107 = vmul.f32 %v64, %v75
    %v108 = vmul.f32 %v64, %v76
    %v109 = vmul.f32 %v64, %v77
    %v110 = vmul.f32 %v64, %v78
    %v111 = vmul.f32 %v64, %v79
    %v112 = vmul.f32 %v69, %v72
    %v113 = vmul.f32 %v69, %v73
    %v114 = vmul.f32 %v69, %v74
    %v115 = vmul.f32 %v69, %v75
    %v116 = vmul.f32 %v69, %v76
    %v117 = vmul.f32 %v69, %v77
    %v118 = vmul.f32 %v69, %v78
    %v119 = vmul.f32 %v69, %v79
    %121 = vset.pattern.permute.xlu0 0
    %122 = vperm.xlu0 %121, %v33
    %v123 = vpop.permute.xlu0 %122
    %126 = vset.pattern.permute.xlu0 0
    %127 = vperm.xlu0 %126, %v34
    %v128 = vpop.permute.xlu0 %127
    %131 = vset.pattern.permute.xlu0 0
    %132 = vperm.xlu0 %131, %v35
    %v133 = vpop.permute.xlu0 %132
    %136 = vset.pattern.permute.xlu0 0
    %137 = vperm.xlu0 %136, %v36
    %v138 = vpop.permute.xlu0 %137
    %v140 = vadd.f32 %v88, %v123
    %v141 = vadd.f32 %v89, %v123
    %v142 = vadd.f32 %v90, %v123
    %v143 = vadd.f32 %v91, %v123
    %v144 = vadd.f32 %v92, %v123
    %v145 = vadd.f32 %v93, %v123
    %v146 = vadd.f32 %v94, %v123
    %v147 = vadd.f32 %v95, %v123
    %v148 = vadd.f32 %v96, %v128
    %v149 = vadd.f32 %v97, %v128
    %v150 = vadd.f32 %v98, %v128
    %v151 = vadd.f32 %v99, %v128
    %v152 = vadd.f32 %v100, %v128
    %v153 = vadd.f32 %v101, %v128
    %v154 = vadd.f32 %v102, %v128
    %v155 = vadd.f32 %v103, %v128
    %v156 = vadd.f32 %v104, %v133
    %v157 = vadd.f32 %v105, %v133
    %v158 = vadd.f32 %v106, %v133
    %v159 = vadd.f32 %v107, %v133
    %v160 = vadd.f32 %v108, %v133
    %v161 = vadd.f32 %v109, %v133
    %v162 = vadd.f32 %v110, %v133
    %v163 = vadd.f32 %v111, %v133
    %v164 = vadd.f32 %v112, %v138
    %v165 = vadd.f32 %v113, %v138
    %v166 = vadd.f32 %v114, %v138
    %v167 = vadd.f32 %v115, %v138
    %v168 = vadd.f32 %v116, %v138
    %v169 = vadd.f32 %v117, %v138
    %v170 = vadd.f32 %v118, %v138
    %v171 = vadd.f32 %v119, %v138
    %v172 = vtanh.pop %v140
    %v173 = vtanh.pop %v141
    %v174 = vtanh.pop %v142
    %v175 = vtanh.pop %v143
    %v176 = vtanh.pop %v144
    %v177 = vtanh.pop %v145
    %v178 = vtanh.pop %v146
    %v179 = vtanh.pop %v147
    %v180 = vtanh.pop %v148
    %v181 = vtanh.pop %v149
    %v182 = vtanh.pop %v150
    %v183 = vtanh.pop %v151
    %v184 = vtanh.pop %v152
    %v185 = vtanh.pop %v153
    %v186 = vtanh.pop %v154
    %v187 = vtanh.pop %v155
    %v188 = vtanh.pop %v156
    %v189 = vtanh.pop %v157
    %v190 = vtanh.pop %v158
    %v191 = vtanh.pop %v159
    %v192 = vtanh.pop %v160
    %v193 = vtanh.pop %v161
    %v194 = vtanh.pop %v162
    %v195 = vtanh.pop %v163
    %v196 = vtanh.pop %v164
    %v197 = vtanh.pop %v165
    %v198 = vtanh.pop %v166
    %v199 = vtanh.pop %v167
    %v200 = vtanh.pop %v168
    %v201 = vtanh.pop %v169
    %v202 = vtanh.pop %v170
    %v203 = vtanh.pop %v171
    %205 = vset.pattern.permute.xlu0 0
    %206 = vperm.xlu0 %205, %v41
    %v207 = vpop.permute.xlu0 %206
    %210 = vset.pattern.permute.xlu0 0
    %211 = vperm.xlu0 %210, %v42
    %v212 = vpop.permute.xlu0 %211
    %215 = vset.pattern.permute.xlu0 0
    %216 = vperm.xlu0 %215, %v43
    %v217 = vpop.permute.xlu0 %216
    %220 = vset.pattern.permute.xlu0 0
    %221 = vperm.xlu0 %220, %v44
    %v222 = vpop.permute.xlu0 %221
    %vm224 = vcmask 261120
    %v226 = vsel %vm224, %v37, 0
    %v229 = vsel %vm224, %v38, 0
    %v232 = vsel %vm224, %v39, 0
    %v235 = vsel %vm224, %v40, 0
    %237 = vmatpush.msra.mxu0 0.0
    %238 = vmatpush.msra.mxu0 0.0
    %239 = vmatpush.msra.mxu0 0.0
    %240 = vmatpush.msra.mxu0 0.0
    %241 = vmatpush.msra.mxu0 0.0
    %242 = vmatpush.msra.mxu0 0.0
    %243 = vmatpush.msra.mxu0 0.0
    %244 = vmatpush.msra.mxu0 0.0
    %245 = vmatpush.msra.mxu0 0.0
    %246 = vmatpush.msra.mxu0 0.0
    %247 = vmatpush.msra.mxu0 0.0
    %248 = vmatpush.msra.mxu0 0.0
    %249 = vmatpush.msra.mxu0 %v196
    %250 = vmatpush.msra.mxu0 %v188
    %251 = vmatpush.msra.mxu0 %v180
    %252 = vmatpush.msra.mxu0 %v172
    %253 = vmatmul.f32.gmra.mxu0 %v226
    %v254 = vpop.f32.mrf.mxu0
    %v255 = vadd.f32 %v207, %v254
    %256 = vmatmul.f32.gmra.mxu0 %v229
    %v257 = vpop.f32.mrf.mxu0
    %v258 = vadd.f32 %v212, %v257
    %259 = vmatmul.f32.gmra.mxu0 %v232
    %v260 = vpop.f32.mrf.mxu0
    %v261 = vadd.f32 %v217, %v260
    %262 = vmatmul.f32.gmra.mxu0 %v235
    %v263 = vpop.f32.mrf.mxu0
    %v264 = vadd.f32 %v222, %v263
    %265 = vdwg.mxu0
    %266 = vmatpush.msra.mxu0 0.0
    %267 = vmatpush.msra.mxu0 0.0
    %268 = vmatpush.msra.mxu0 0.0
    %269 = vmatpush.msra.mxu0 0.0
    %270 = vmatpush.msra.mxu0 0.0
    %271 = vmatpush.msra.mxu0 0.0
    %272 = vmatpush.msra.mxu0 0.0
    %273 = vmatpush.msra.mxu0 0.0
    %274 = vmatpush.msra.mxu0 0.0
    %275 = vmatpush.msra.mxu0 0.0
    %276 = vmatpush.msra.mxu0 0.0
    %277 = vmatpush.msra.mxu0 0.0
    %278 = vmatpush.msra.mxu0 %v197
    %279 = vmatpush.msra.mxu0 %v189
    %280 = vmatpush.msra.mxu0 %v181
    %281 = vmatpush.msra.mxu0 %v173
    %282 = vmatmul.f32.gmra.mxu0 %v226
    %v283 = vpop.f32.mrf.mxu0
    %v284 = vadd.f32 %v207, %v283
    %285 = vmatmul.f32.gmra.mxu0 %v229
    %v286 = vpop.f32.mrf.mxu0
    %v287 = vadd.f32 %v212, %v286
    %288 = vmatmul.f32.gmra.mxu0 %v232
    %v289 = vpop.f32.mrf.mxu0
    %v290 = vadd.f32 %v217, %v289
    %291 = vmatmul.f32.gmra.mxu0 %v235
    %v292 = vpop.f32.mrf.mxu0
    %v293 = vadd.f32 %v222, %v292
    %294 = vdwg.mxu0
    %295 = vmatpush.msra.mxu0 0.0
    %296 = vmatpush.msra.mxu0 0.0
    %297 = vmatpush.msra.mxu0 0.0
    %298 = vmatpush.msra.mxu0 0.0
    %299 = vmatpush.msra.mxu0 0.0
    %300 = vmatpush.msra.mxu0 0.0
    %301 = vmatpush.msra.mxu0 0.0
    %302 = vmatpush.msra.mxu0 0.0
    %303 = vmatpush.msra.mxu0 0.0
    %304 = vmatpush.msra.mxu0 0.0
    %305 = vmatpush.msra.mxu0 0.0
    %306 = vmatpush.msra.mxu0 0.0
    %307 = vmatpush.msra.mxu0 %v198
    %308 = vmatpush.msra.mxu0 %v190
    %309 = vmatpush.msra.mxu0 %v182
    %310 = vmatpush.msra.mxu0 %v174
    %311 = vmatmul.f32.gmra.mxu0 %v226
    %v312 = vpop.f32.mrf.mxu0
    %v313 = vadd.f32 %v207, %v312
    %314 = vmatmul.f32.gmra.mxu0 %v229
    %v315 = vpop.f32.mrf.mxu0
    %v316 = vadd.f32 %v212, %v315
    %317 = vmatmul.f32.gmra.mxu0 %v232
    %v318 = vpop.f32.mrf.mxu0
    %v319 = vadd.f32 %v217, %v318
    %320 = vmatmul.f32.gmra.mxu0 %v235
    %v321 = vpop.f32.mrf.mxu0
    %v322 = vadd.f32 %v222, %v321
    %323 = vdwg.mxu0
    %324 = vmatpush.msra.mxu0 0.0
    %325 = vmatpush.msra.mxu0 0.0
    %326 = vmatpush.msra.mxu0 0.0
    %327 = vmatpush.msra.mxu0 0.0
    %328 = vmatpush.msra.mxu0 0.0
    %329 = vmatpush.msra.mxu0 0.0
    %330 = vmatpush.msra.mxu0 0.0
    %331 = vmatpush.msra.mxu0 0.0
    %332 = vmatpush.msra.mxu0 0.0
    %333 = vmatpush.msra.mxu0 0.0
    %334 = vmatpush.msra.mxu0 0.0
    %335 = vmatpush.msra.mxu0 0.0
    %336 = vmatpush.msra.mxu0 %v199
    %337 = vmatpush.msra.mxu0 %v191
    %338 = vmatpush.msra.mxu0 %v183
    %339 = vmatpush.msra.mxu0 %v175
    %340 = vmatmul.f32.gmra.mxu0 %v226
    %v341 = vpop.f32.mrf.mxu0
    %v342 = vadd.f32 %v207, %v341
    %343 = vmatmul.f32.gmra.mxu0 %v229
    %v344 = vpop.f32.mrf.mxu0
    %v345 = vadd.f32 %v212, %v344
    %346 = vmatmul.f32.gmra.mxu0 %v232
    %v347 = vpop.f32.mrf.mxu0
    %v348 = vadd.f32 %v217, %v347
    %349 = vmatmul.f32.gmra.mxu0 %v235
    %v350 = vpop.f32.mrf.mxu0
    %v351 = vadd.f32 %v222, %v350
    %352 = vdwg.mxu0
    %353 = vmatpush.msra.mxu0 0.0
    %354 = vmatpush.msra.mxu0 0.0
    %355 = vmatpush.msra.mxu0 0.0
    %356 = vmatpush.msra.mxu0 0.0
    %357 = vmatpush.msra.mxu0 0.0
    %358 = vmatpush.msra.mxu0 0.0
    %359 = vmatpush.msra.mxu0 0.0
    %360 = vmatpush.msra.mxu0 0.0
    %361 = vmatpush.msra.mxu0 0.0
    %362 = vmatpush.msra.mxu0 0.0
    %363 = vmatpush.msra.mxu0 0.0
    %364 = vmatpush.msra.mxu0 0.0
    %365 = vmatpush.msra.mxu0 %v200
    %366 = vmatpush.msra.mxu0 %v192
    %367 = vmatpush.msra.mxu0 %v184
    %368 = vmatpush.msra.mxu0 %v176
    %369 = vmatmul.f32.gmra.mxu0 %v226
    %v370 = vpop.f32.mrf.mxu0
    %v371 = vadd.f32 %v207, %v370
    %372 = vmatmul.f32.gmra.mxu0 %v229
    %v373 = vpop.f32.mrf.mxu0
    %v374 = vadd.f32 %v212, %v373
    %375 = vmatmul.f32.gmra.mxu0 %v232
    %v376 = vpop.f32.mrf.mxu0
    %v377 = vadd.f32 %v217, %v376
    %378 = vmatmul.f32.gmra.mxu0 %v235
    %v379 = vpop.f32.mrf.mxu0
    %v380 = vadd.f32 %v222, %v379
    %381 = vdwg.mxu0
    %382 = vmatpush.msra.mxu0 0.0
    %383 = vmatpush.msra.mxu0 0.0
    %384 = vmatpush.msra.mxu0 0.0
    %385 = vmatpush.msra.mxu0 0.0
    %386 = vmatpush.msra.mxu0 0.0
    %387 = vmatpush.msra.mxu0 0.0
    %388 = vmatpush.msra.mxu0 0.0
    %389 = vmatpush.msra.mxu0 0.0
    %390 = vmatpush.msra.mxu0 0.0
    %391 = vmatpush.msra.mxu0 0.0
    %392 = vmatpush.msra.mxu0 0.0
    %393 = vmatpush.msra.mxu0 0.0
    %394 = vmatpush.msra.mxu0 %v201
    %395 = vmatpush.msra.mxu0 %v193
    %396 = vmatpush.msra.mxu0 %v185
    %397 = vmatpush.msra.mxu0 %v177
    %398 = vmatmul.f32.gmra.mxu0 %v226
    %v399 = vpop.f32.mrf.mxu0
    %v400 = vadd.f32 %v207, %v399
    %401 = vmatmul.f32.gmra.mxu0 %v229
    %v402 = vpop.f32.mrf.mxu0
    %v403 = vadd.f32 %v212, %v402
    %404 = vmatmul.f32.gmra.mxu0 %v232
    %v405 = vpop.f32.mrf.mxu0
    %v406 = vadd.f32 %v217, %v405
    %407 = vmatmul.f32.gmra.mxu0 %v235
    %v408 = vpop.f32.mrf.mxu0
    %v409 = vadd.f32 %v222, %v408
    %410 = vdwg.mxu0
    %411 = vmatpush.msra.mxu0 0.0
    %412 = vmatpush.msra.mxu0 0.0
    %413 = vmatpush.msra.mxu0 0.0
    %414 = vmatpush.msra.mxu0 0.0
    %415 = vmatpush.msra.mxu0 0.0
    %416 = vmatpush.msra.mxu0 0.0
    %417 = vmatpush.msra.mxu0 0.0
    %418 = vmatpush.msra.mxu0 0.0
    %419 = vmatpush.msra.mxu0 0.0
    %420 = vmatpush.msra.mxu0 0.0
    %421 = vmatpush.msra.mxu0 0.0
    %422 = vmatpush.msra.mxu0 0.0
    %423 = vmatpush.msra.mxu0 %v202
    %424 = vmatpush.msra.mxu0 %v194
    %425 = vmatpush.msra.mxu0 %v186
    %426 = vmatpush.msra.mxu0 %v178
    %427 = vmatmul.f32.gmra.mxu0 %v226
    %v428 = vpop.f32.mrf.mxu0
    %v429 = vadd.f32 %v207, %v428
    %430 = vmatmul.f32.gmra.mxu0 %v229
    %v431 = vpop.f32.mrf.mxu0
    %v432 = vadd.f32 %v212, %v431
    %433 = vmatmul.f32.gmra.mxu0 %v232
    %v434 = vpop.f32.mrf.mxu0
    %v435 = vadd.f32 %v217, %v434
    %436 = vmatmul.f32.gmra.mxu0 %v235
    %v437 = vpop.f32.mrf.mxu0
    %v438 = vadd.f32 %v222, %v437
    %439 = vdwg.mxu0
    %440 = vmatpush.msra.mxu0 0.0
    %441 = vmatpush.msra.mxu0 0.0
    %442 = vmatpush.msra.mxu0 0.0
    %443 = vmatpush.msra.mxu0 0.0
    %444 = vmatpush.msra.mxu0 0.0
    %445 = vmatpush.msra.mxu0 0.0
    %446 = vmatpush.msra.mxu0 0.0
    %447 = vmatpush.msra.mxu0 0.0
    %448 = vmatpush.msra.mxu0 0.0
    %449 = vmatpush.msra.mxu0 0.0
    %450 = vmatpush.msra.mxu0 0.0
    %451 = vmatpush.msra.mxu0 0.0
    %452 = vmatpush.msra.mxu0 %v203
    %453 = vmatpush.msra.mxu0 %v195
    %454 = vmatpush.msra.mxu0 %v187
    %455 = vmatpush.msra.mxu0 %v179
    %456 = vmatmul.f32.gmra.mxu0 %v226
    %v457 = vpop.f32.mrf.mxu0
    %v458 = vadd.f32 %v207, %v457
    %459 = vmatmul.f32.gmra.mxu0 %v229
    %v460 = vpop.f32.mrf.mxu0
    %v461 = vadd.f32 %v212, %v460
    %462 = vmatmul.f32.gmra.mxu0 %v232
    %v463 = vpop.f32.mrf.mxu0
    %v464 = vadd.f32 %v217, %v463
    %465 = vmatmul.f32.gmra.mxu0 %v235
    %v466 = vpop.f32.mrf.mxu0
    %v467 = vadd.f32 %v222, %v466
    %468 = vdwg.mxu0
    %v469 = vtanh.pop %v255
    %v470 = vtanh.pop %v284
    %v471 = vtanh.pop %v313
    %v472 = vtanh.pop %v342
    %v473 = vtanh.pop %v371
    %v474 = vtanh.pop %v400
    %v475 = vtanh.pop %v429
    %v476 = vtanh.pop %v458
    %v477 = vtanh.pop %v258
    %v478 = vtanh.pop %v287
    %v479 = vtanh.pop %v316
    %v480 = vtanh.pop %v345
    %v481 = vtanh.pop %v374
    %v482 = vtanh.pop %v403
    %v483 = vtanh.pop %v432
    %v484 = vtanh.pop %v461
    %v485 = vtanh.pop %v261
    %v486 = vtanh.pop %v290
    %v487 = vtanh.pop %v319
    %v488 = vtanh.pop %v348
    %v489 = vtanh.pop %v377
    %v490 = vtanh.pop %v406
    %v491 = vtanh.pop %v435
    %v492 = vtanh.pop %v464
    %v493 = vtanh.pop %v264
    %v494 = vtanh.pop %v293
    %v495 = vtanh.pop %v322
    %v496 = vtanh.pop %v351
    %v497 = vtanh.pop %v380
    %v498 = vtanh.pop %v409
    %v499 = vtanh.pop %v438
    %v500 = vtanh.pop %v467
    %502 = vset.pattern.permute.xlu0 0
    %503 = vperm.xlu0 %502, %v45
    %v504 = vpop.permute.xlu0 %503
    %507 = vset.pattern.permute.xlu0 0
    %508 = vperm.xlu0 %507, %v46
    %v509 = vpop.permute.xlu0 %508
    %512 = vset.pattern.permute.xlu0 0
    %513 = vperm.xlu0 %512, %v47
    %v514 = vpop.permute.xlu0 %513
    %517 = vset.pattern.permute.xlu0 0
    %518 = vperm.xlu0 %517, %v48
    %v519 = vpop.permute.xlu0 %518
    %v521 = vmul.f32 %v469, %v504
    %v522 = vmul.f32 %v470, %v504
    %v523 = vmul.f32 %v471, %v504
    %v524 = vmul.f32 %v472, %v504
    %v525 = vmul.f32 %v473, %v504
    %v526 = vmul.f32 %v474, %v504
    %v527 = vmul.f32 %v475, %v504
    %v528 = vmul.f32 %v476, %v504
    %v529 = vmul.f32 %v477, %v509
    %v530 = vmul.f32 %v478, %v509
    %v531 = vmul.f32 %v479, %v509
    %v532 = vmul.f32 %v480, %v509
    %v533 = vmul.f32 %v481, %v509
    %v534 = vmul.f32 %v482, %v509
    %v535 = vmul.f32 %v483, %v509
    %v536 = vmul.f32 %v484, %v509
    %v537 = vmul.f32 %v485, %v514
    %v538 = vmul.f32 %v486, %v514
    %v539 = vmul.f32 %v487, %v514
    %v540 = vmul.f32 %v488, %v514
    %v541 = vmul.f32 %v489, %v514
    %v542 = vmul.f32 %v490, %v514
    %v543 = vmul.f32 %v491, %v514
    %v544 = vmul.f32 %v492, %v514
    %v545 = vmul.f32 %v493, %v519
    %v546 = vmul.f32 %v494, %v519
    %v547 = vmul.f32 %v495, %v519
    %v548 = vmul.f32 %v496, %v519
    %v549 = vmul.f32 %v497, %v519
    %v550 = vmul.f32 %v498, %v519
    %v551 = vmul.f32 %v499, %v519
    %v552 = vmul.f32 %v500, %v519
    %v553 = vadd.f32 %v521, %v529
    %v554 = vadd.f32 %v553, %v537
    %v555 = vadd.f32 %v554, %v545
    %v556 = vrot.slane %v555, 4
    %v557 = vadd.f32 %v555, %v556
    %v558 = vrot.slane %v557, 2
    %v559 = vadd.f32 %v557, %v558
    %v560 = vrot.slane %v559, 1
    %v561 = vadd.f32 %v559, %v560
    %v562 = vadd.f32 %v522, %v530
    %v563 = vadd.f32 %v562, %v538
    %v564 = vadd.f32 %v563, %v546
    %v565 = vrot.slane %v564, 4
    %v566 = vadd.f32 %v564, %v565
    %v567 = vrot.slane %v566, 2
    %v568 = vadd.f32 %v566, %v567
    %v569 = vrot.slane %v568, 1
    %v570 = vadd.f32 %v568, %v569
    %v571 = vadd.f32 %v523, %v531
    %v572 = vadd.f32 %v571, %v539
    %v573 = vadd.f32 %v572, %v547
    %v574 = vrot.slane %v573, 4
    %v575 = vadd.f32 %v573, %v574
    %v576 = vrot.slane %v575, 2
    %v577 = vadd.f32 %v575, %v576
    %v578 = vrot.slane %v577, 1
    %v579 = vadd.f32 %v577, %v578
    %v580 = vadd.f32 %v524, %v532
    %v581 = vadd.f32 %v580, %v540
    %v582 = vadd.f32 %v581, %v548
    %v583 = vrot.slane %v582, 4
    %v584 = vadd.f32 %v582, %v583
    %v585 = vrot.slane %v584, 2
    %v586 = vadd.f32 %v584, %v585
    %v587 = vrot.slane %v586, 1
    %v588 = vadd.f32 %v586, %v587
    %v589 = vadd.f32 %v525, %v533
    %v590 = vadd.f32 %v589, %v541
    %v591 = vadd.f32 %v590, %v549
    %v592 = vrot.slane %v591, 4
    %v593 = vadd.f32 %v591, %v592
    %v594 = vrot.slane %v593, 2
    %v595 = vadd.f32 %v593, %v594
    %v596 = vrot.slane %v595, 1
    %v597 = vadd.f32 %v595, %v596
    %v598 = vadd.f32 %v526, %v534
    %v599 = vadd.f32 %v598, %v542
    %v600 = vadd.f32 %v599, %v550
    %v601 = vrot.slane %v600, 4
    %v602 = vadd.f32 %v600, %v601
    %v603 = vrot.slane %v602, 2
    %v604 = vadd.f32 %v602, %v603
    %v605 = vrot.slane %v604, 1
    %v606 = vadd.f32 %v604, %v605
    %v607 = vadd.f32 %v527, %v535
    %v608 = vadd.f32 %v607, %v543
    %v609 = vadd.f32 %v608, %v551
    %v610 = vrot.slane %v609, 4
    %v611 = vadd.f32 %v609, %v610
    %v612 = vrot.slane %v611, 2
    %v613 = vadd.f32 %v611, %v612
    %v614 = vrot.slane %v613, 1
    %v615 = vadd.f32 %v613, %v614
    %v616 = vadd.f32 %v528, %v536
    %v617 = vadd.f32 %v616, %v544
    %v618 = vadd.f32 %v617, %v552
    %v619 = vrot.slane %v618, 4
    %v620 = vadd.f32 %v618, %v619
    %v621 = vrot.slane %v620, 2
    %v622 = vadd.f32 %v620, %v621
    %v623 = vrot.slane %v622, 1
    %v624 = vadd.f32 %v622, %v623
    %626 = vset.pattern.permute.xlu0 0
    %627 = vperm.xlu0 %626, %v49
    %v628 = vpop.permute.xlu0 %627
    %v630 = vperm.slane %v628, 0
    %v631 = vadd.f32 %v561, %v630
    %v632 = vadd.f32 %v570, %v630
    %v633 = vadd.f32 %v579, %v630
    %v634 = vadd.f32 %v588, %v630
    %v635 = vadd.f32 %v597, %v630
    %v636 = vadd.f32 %v606, %v630
    %v637 = vadd.f32 %v615, %v630
    %v638 = vadd.f32 %v624, %v630
    %v647 = vrot.slane %v632, 7
    %v648 = vrot.slane %v633, 6
    %v649 = vrot.slane %v634, 5
    %v650 = vrot.slane %v635, 4
    %v651 = vrot.slane %v636, 3
    %v652 = vrot.slane %v637, 2
    %v653 = vrot.slane %v638, 1
    %vm654 = vcmask 1040384
    %v655 = vsel %vm654, %v631, %v647
    %vm656 = vcmask 1042434
    %v657 = vsel %vm656, %v648, %v649
    %vm658 = vcmask 1041408
    %v659 = vsel %vm658, %v655, %v657
    %vm660 = vcmask 1044484
    %v661 = vsel %vm660, %v650, %v651
    %vm662 = vcmask 1046534
    %v663 = vsel %vm662, %v652, %v653
    %vm664 = vcmask 1045508
    %v665 = vsel %vm664, %v661, %v663
    %vm666 = vcmask 1043456
    %v667 = vsel %vm666, %v659, %v665
    %669 = vst [vmem:[#allocation3] sm:$0xff] %v667
    // Predicated region
    $region30: #{tpu_custom_call.1} parent=1 // pred_check
      _
    $region31: #{tpu_custom_call.1} parent=1 // pred_check_branch
      %671 = sbr.rel (0) target = $region33
    $region32: #{tpu_custom_call.1} parent=1 // pred_region
      %673 = vsyncadd [#allocation4], 0
      %s675 = sshll.u32 [#allocation3], 4
      %s676 = int_to_ptr.vmem [resolvable:$true] %s675
      %s677 = sshll.u32 %s7, 4
      %s678 = int_to_ptr.hbm [resolvable:$true] %s677
      %680 = dma.vmem_to_hbm [thread:$0]  %s676, 128, %s678, [#allocation4]
    $region33: #{tpu_custom_call.1} parent=1 // pred_fallthru
      _
    // Predicated region
    $region34: #{tpu_custom_call.1} parent=1 // pred_check
      _
    $region35: #{tpu_custom_call.1} parent=1 // pred_check_branch
      %682 = sbr.rel (0) target = $region37
    $region36: #{tpu_custom_call.1} parent=1 // pred_region
      %684 = dma.done [#allocation4], 128
    $region37: #{tpu_custom_call.1} parent=1 // pred_fallthru
      _
    %685 = vsyncpa [#allocation4], 1

</llo_original>
